<compile_context>
chip_gen: v6e
topology: v6e:2x2x1
jax: 0.10.0
libtpu: 0.0.40
codegen_flags: <defaults>
</compile_context>

<pallas_src>
import functools

import jax
import jax.numpy as jnp
from jax import lax
from jax.experimental import pallas as pl
from jax.experimental.pallas import tpu as pltpu

LANE = 128


def _round_up(x, m):
    return ((x + m - 1) // m) * m


# ----------------------------- Pallas kernel ------------------------------
def kvb_kernel(pooled_ref, wk_ref, vdec_ref, out_ref, run_max_ref, *, num_keys):
    # pooled_ref:  [TB, C]        bf16   (batch tile, resident across key axis)
    # wk_ref:      [C, TK]        bf16   (key-table tile, encoder fold baked in)
    # vdec_ref:    [TK, NC_pad]   bf16   (value-table tile, decoder+bias baked in)
    # out_ref:     [TB, NC_pad]   f32    (accumulator: selected value so far)
    # run_max_ref: [TB, 1]        f32    (running max similarity)
    k = pl.program_id(1)
    tk = wk_ref.shape[1]

    @pl.when(k == 0)
    def _():
        run_max_ref[...] = jnp.full_like(run_max_ref, -jnp.inf)
        out_ref[...] = jnp.zeros_like(out_ref)

    # similarities tile = pooled @ wk   (MXU, f32 accumulation)
    sims = jnp.dot(pooled_ref[...], wk_ref[...],
                   preferred_element_type=jnp.float32)           # [TB, TK]

    col = lax.broadcasted_iota(jnp.int32, (1, tk), 1)            # [1, TK]
    # Mask padded key columns (only present in the last key tile).
    sims = jnp.where(k * tk + col < num_keys, sims, -jnp.inf)

    # In-tile argmax with PyTorch tie-breaking (first max index).
    tile_max = jnp.max(sims, axis=1, keepdims=True)              # [TB, 1]
    idx = jnp.min(jnp.where(sims >= tile_max, col, tk),
                  axis=1, keepdims=True)                         # [TB, 1]
    onehot = (col == idx).astype(jnp.bfloat16)                   # [TB, TK]

    # Gather (one-hot @ values_dec): exact row-select of bf16 table (MXU).
    tile_val = jnp.dot(onehot, vdec_ref[...],
                       preferred_element_type=jnp.float32)       # [TB, NCp]

    # Online update across key tiles; strict '>' keeps the FIRST global max
    # on ties (PyTorch argmax semantics across the whole key axis).
    upd = tile_max > run_max_ref[...]                            # [TB, 1]
    out_ref[...] = jnp.where(upd, tile_val, out_ref[...])
    run_max_ref[...] = jnp.maximum(run_max_ref[...], tile_max)


# --------------------------- one-time param prep ---------------------------
def prep_params(params, *, key_tile=512):
    """Fold / pad / transpose / cast parameters once (out of the hot path)."""
    num_keys, _ = params["keys"].shape
    C = params["w_enc"].shape[0]
    n_classes = params["w_dec"].shape[0]

    tk = min(key_tile, _round_up(num_keys, LANE))   # key tile (multiple of 128)
    nk_pad = _round_up(num_keys, tk)
    nc_pad = _round_up(n_classes, LANE)

    # Fold encoder projection into the key table:  wk = w_enc @ keys.T
    wk = jnp.dot(params["w_enc"], params["keys"].T,
                 preferred_element_type=jnp.float32)             # [C, NK]
    wk_p = jnp.zeros((C, nk_pad), jnp.bfloat16)
    wk_p = wk_p.at[:, :num_keys].set(wk.astype(jnp.bfloat16))

    # Fold decoder into the value table:  values_dec = values @ w_dec.T + b
    vdec = (jnp.dot(params["values"], params["w_dec"].T,
                    preferred_element_type=jnp.float32)
            + params["b_dec"][None, :])                          # [NK, NC]
    vdec_p = jnp.zeros((nk_pad, nc_pad), jnp.bfloat16)
    vdec_p = vdec_p.at[:num_keys, :n_classes].set(vdec.astype(jnp.bfloat16))

    return {"wk": wk_p, "values_dec": vdec_p, "key_tile": tk,
            "num_keys": num_keys, "n_classes": n_classes}


# ------------------------------- wrapper -----------------------------------
def key_value_bottleneck(pooled, prepped):
    """pooled: [B, C] bf16; returns [B, n_classes] f32."""
    B, C = pooled.shape
    wk, vdec = prepped["wk"], prepped["values_dec"]
    nk_pad, nc_pad = wk.shape[1], vdec.shape[1]
    tk = prepped["key_tile"]
    num_keys, n_classes = prepped["num_keys"], prepped["n_classes"]

    # Batch tile: multiple of 16 (bf16 sublane packing), up to 256 rows to
    # fill the 256-wide MXUs on v6e/v7x.  If that leaves a single grid step,
    # halve it so the "parallel" axis gives both v7x TensorCores work.
    tb = min(256, _round_up(B, 16))
    if _round_up(B, tb) // tb < 2 and tb > 16:
        tb = _round_up((tb + 1) // 2, 16)
    b_pad = _round_up(B, tb)
    if b_pad != B:
        pooled = jnp.zeros((b_pad, C), pooled.dtype).at[:B].set(pooled)

    # Explicit scoped-VMEM budget from the actual (double-buffered) tiles.
    vmem_bytes = (2 * tb * C * 2 + 2 * C * tk * 2 + 2 * tk * nc_pad * 2
                  + 2 * tb * nc_pad * 4 + tb * 4)
    vmem_limit = int(min(100 << 20, max(16 << 20, 2 * vmem_bytes + (4 << 20))))

    out = pl.pallas_call(
        functools.partial(kvb_kernel, num_keys=num_keys),
        out_shape=jax.ShapeDtypeStruct((b_pad, nc_pad), jnp.float32),
        grid_spec=pltpu.PrefetchScalarGridSpec(
            num_scalar_prefetch=0,
            grid=(b_pad // tb, nk_pad // tk),        # (batch, keys) keys last
            in_specs=[
                pl.BlockSpec((tb, C), lambda i, k: (i, 0)),        # pooled tile
                pl.BlockSpec((C, tk), lambda i, k: (0, k)),        # wk tile
                pl.BlockSpec((tk, nc_pad), lambda i, k: (k, 0)),   # values_dec
            ],
            out_specs=pl.BlockSpec((tb, nc_pad), lambda i, k: (i, 0)),
            scratch_shapes=[pltpu.VMEM((tb, 1), jnp.float32)],     # running max
        ),
        compiler_params=pltpu.CompilerParams(
            dimension_semantics=("parallel", "arbitrary"),
            vmem_limit_bytes=vmem_limit),
    )(pooled, wk, vdec)

    return out[:B, :n_classes]


# ----------------------------- JAX glue -----------------------------------
def encoder_pool(x):
    # TODO(synk): the real pretrained encoder (nn.Sequential(...)[:-1]) is
    # external/undefined; using a deterministic global-average-pool stand-in.
    # Its C -> key_dim projection is algebraically folded into the key table.
    return jnp.mean(x, axis=(2, 3)).astype(jnp.bfloat16)        # [B, C]


def forward(x, prepped):
    pooled = encoder_pool(x)
    return key_value_bottleneck(pooled, prepped)


def forward_ref(x, prepped):
    """Pure-JAX reference of the SAME fused graph / precision policy:
    sims = pooled @ wk (f32 acc), first-max argmax, gather of the folded
    (decoder+bias) bf16 value table."""
    pooled = encoder_pool(x)
    wk = prepped["wk"][:, :prepped["num_keys"]]
    sims = jnp.dot(pooled, wk, preferred_element_type=jnp.float32)
    idx = jnp.argmax(sims, axis=1)                    # first-max tie-break
    vdec = prepped["values_dec"][:prepped["num_keys"], :prepped["n_classes"]]
    return vdec[idx].astype(jnp.float32)


# ----------------------------- main ----------------------------------------
if __name__ == "__main__":
    B, C, H, W = 2, 4, 16, 16
    num_keys, key_dim, value_dim, n_classes = 100, 128, 128, 10

    key = jax.random.PRNGKey(0)
    k_x, k_enc, k_keys, k_vals, k_wd, k_bd = jax.random.split(key, 6)

    x = jax.random.normal(k_x, (B, C, H, W), dtype=jnp.float32)

    bound = 1.0 / jnp.sqrt(value_dim)
    params = {
        "w_enc": jax.random.normal(k_enc, (C, key_dim), dtype=jnp.float32) * 0.1,
        "keys": jax.random.normal(k_keys, (num_keys, key_dim), dtype=jnp.float32),
        "values": jax.random.normal(k_vals, (num_keys, value_dim), dtype=jnp.float32),
        # nn.Linear(value_dim, 10): weight [10, value_dim], bias [10]
        "w_dec": jax.random.uniform(k_wd, (n_classes, value_dim),
                                    minval=-bound, maxval=bound, dtype=jnp.float32),
        "b_dec": jax.random.uniform(k_bd, (n_classes,),
                                    minval=-bound, maxval=bound, dtype=jnp.float32),
    }

    prepped = prep_params(params)   # one-time: fold / pad / cast

    out = jax.block_until_ready(forward(x, prepped))
    ref = jax.block_until_ready(forward_ref(x, prepped))

    assert out.shape == (B, n_classes)
    assert jnp.allclose(out, ref, atol=2e-3, rtol=2e-3), "mismatch vs reference"
    print("KERNEL_OK")
</pallas_src>

<mosaic_0001>
module attributes {stable_mosaic.version = 11 : i64} {
  func.func @kvb_kernel(%arg0: i32, %arg1: i32, %arg2: memref<16x4xbf16, #tpu.memory_space<vmem>>, %arg3: memref<4x128xbf16, #tpu.memory_space<vmem>>, %arg4: memref<128x128xbf16, #tpu.memory_space<vmem>>, %arg5: memref<16x128xf32, #tpu.memory_space<vmem>>, %arg6: memref<16x1xf32, #tpu.memory_space<vmem>>) attributes {dimension_semantics = [#tpu.dimension_semantics<parallel>, #tpu.dimension_semantics<arbitrary>], iteration_bounds = array<i64: 1, 1>, scalar_prefetch = 0 : i64, scratch_operands = 1 : i64, tpu.core_type = #tpu.core_type<tc>, window_params = [{transform_indices = @transform_0, window_bounds = array<i64: 16, 4>}, {transform_indices = @transform_1, window_bounds = array<i64: 4, 128>}, {transform_indices = @transform_2, window_bounds = array<i64: 128, 128>}, {transform_indices = @transform_3, window_bounds = array<i64: 16, 128>}]} {
    %c0_i32 = arith.constant 0 : i32
    %0 = arith.cmpi eq, %arg1, %c0_i32 : i32
    %1 = arith.extui %0 : i1 to i32
    %c0_i32_0 = arith.constant 0 : i32
    %2 = arith.cmpi ne, %1, %c0_i32_0 : i32
    scf.if %2 {
      %cst_21 = arith.constant 0xFF800000 : f32
      %44 = vector.broadcast %cst_21 : f32 to vector<16x1xf32>
      %c0_22 = arith.constant 0 : index
      %c0_23 = arith.constant 0 : index
      %45 = vector.load %arg6[%c0_22, %c0_23] : memref<16x1xf32, #tpu.memory_space<vmem>>, vector<16x1xf32>
      tpu.vector_store %arg6[%c0_22, %c0_23], %44 {strides = array<i32>} : memref<16x1xf32, #tpu.memory_space<vmem>>, vector<16x1xf32>,
      %cst_24 = arith.constant 0.000000e+00 : f32
      %46 = vector.broadcast %cst_24 : f32 to vector<16x128xf32>
      %c0_25 = arith.constant 0 : index
      %c0_26 = arith.constant 0 : index
      %47 = vector.load %arg5[%c0_25, %c0_26] : memref<16x128xf32, #tpu.memory_space<vmem>>, vector<16x128xf32>
      tpu.vector_store %arg5[%c0_25, %c0_26], %46 {strides = array<i32>} : memref<16x128xf32, #tpu.memory_space<vmem>>, vector<16x128xf32>,
    } else {
    }
    %c0 = arith.constant 0 : index
    %c0_1 = arith.constant 0 : index
    %3 = vector.load %arg2[%c0, %c0_1] : memref<16x4xbf16, #tpu.memory_space<vmem>>, vector<16x4xbf16>
    %c0_2 = arith.constant 0 : index
    %c0_3 = arith.constant 0 : index
    %4 = vector.load %arg3[%c0_2, %c0_3] : memref<4x128xbf16, #tpu.memory_space<vmem>>, vector<4x128xbf16>
    %cst = arith.constant dense<0.000000e+00> : vector<16x128xf32>
    %5 = tpu.matmul %3, %4, %cst {dimension_numbers = #tpu.dot_dimension_numbers<[1], [0], [0], [1], [0, 0, 1, 1], [], []>} : vector<16x4xbf16>, vector<4x128xbf16>, vector<16x128xf32> -> vector<16x128xf32>
    %6 = tpu.iota {dimensions = array<i32: 1>} : vector<1x128xi32>
    %c128_i32 = arith.constant 128 : i32
    %7 = arith.muli %arg1, %c128_i32 : i32
    %8 = vector.broadcast %7 : i32 to vector<1x128xi32>
    %9 = arith.addi %8, %6 : vector<1x128xi32>
    %c100_i32 = arith.constant 100 : i32
    %10 = vector.broadcast %c100_i32 : i32 to vector<1x128xi32>
    %11 = arith.cmpi slt, %9, %10 : vector<1x128xi32>
    %cst_4 = arith.constant 0xFF800000 : f32
    %12 = vector.shape_cast %11 : vector<1x128xi1> to vector<1x128xi1>
    %13 = vector.broadcast %12 : vector<1x128xi1> to vector<16x128xi1>
    %14 = vector.broadcast %cst_4 : f32 to vector<16x128xf32>
    %15 = arith.select %13, %5, %14 : vector<16x128xi1>, vector<16x128xf32>
    %cst_5 = arith.constant dense<0xFF800000> : vector<16xf32>
    %16 = vector.multi_reduction <maximumf>, %15, %cst_5 [1] : vector<16x128xf32> to vector<16xf32>
    %17 = vector.shape_cast %16 : vector<16xf32> to vector<16x1xf32>
    %18 = vector.broadcast %17 : vector<16x1xf32> to vector<16x128xf32>
    %19 = arith.cmpf oge, %15, %18 : vector<16x128xf32>
    %c128_i32_6 = arith.constant 128 : i32
    %20 = vector.shape_cast %6 : vector<1x128xi32> to vector<1x128xi32>
    %21 = vector.broadcast %20 : vector<1x128xi32> to vector<16x128xi32>
    %22 = vector.broadcast %c128_i32_6 : i32 to vector<16x128xi32>
    %23 = arith.select %19, %21, %22 : vector<16x128xi1>, vector<16x128xi32>
    %cst_7 = arith.constant dense<2147483647> : vector<16xi32>
    %24 = vector.multi_reduction <minsi>, %23, %cst_7 [1] : vector<16x128xi32> to vector<16xi32>
    %25 = vector.shape_cast %24 : vector<16xi32> to vector<16x1xi32>
    %26 = vector.broadcast %6 : vector<1x128xi32> to vector<16x128xi32>
    %27 = vector.broadcast %25 : vector<16x1xi32> to vector<16x128xi32>
    %28 = arith.cmpi eq, %26, %27 : vector<16x128xi32>
    %29 = arith.extui %28 : vector<16x128xi1> to vector<16x128xi32>
    %30 = arith.sitofp %29 : vector<16x128xi32> to vector<16x128xf32>
    %31 = arith.truncf %30 : vector<16x128xf32> to vector<16x128xbf16>
    %c0_8 = arith.constant 0 : index
    %c0_9 = arith.constant 0 : index
    %32 = vector.load %arg4[%c0_8, %c0_9] : memref<128x128xbf16, #tpu.memory_space<vmem>>, vector<128x128xbf16>
    %cst_10 = arith.constant dense<0.000000e+00> : vector<16x128xf32>
    %33 = tpu.matmul %31, %32, %cst_10 {dimension_numbers = #tpu.dot_dimension_numbers<[1], [0], [0], [1], [0, 0, 1, 1], [], []>} : vector<16x128xbf16>, vector<128x128xbf16>, vector<16x128xf32> -> vector<16x128xf32>
    %c0_11 = arith.constant 0 : index
    %c0_12 = arith.constant 0 : index
    %34 = vector.load %arg6[%c0_11, %c0_12] : memref<16x1xf32, #tpu.memory_space<vmem>>, vector<16x1xf32>
    %35 = arith.cmpf ogt, %17, %34 : vector<16x1xf32>
    %c0_13 = arith.constant 0 : index
    %c0_14 = arith.constant 0 : index
    %36 = vector.load %arg5[%c0_13, %c0_14] : memref<16x128xf32, #tpu.memory_space<vmem>>, vector<16x128xf32>
    %37 = vector.shape_cast %35 : vector<16x1xi1> to vector<16x1xi1>
    %38 = vector.broadcast %37 : vector<16x1xi1> to vector<16x128xi1>
    %39 = arith.select %38, %33, %36 : vector<16x128xi1>, vector<16x128xf32>
    %c0_15 = arith.constant 0 : index
    %c0_16 = arith.constant 0 : index
    %40 = vector.load %arg5[%c0_15, %c0_16] : memref<16x128xf32, #tpu.memory_space<vmem>>, vector<16x128xf32>
    tpu.vector_store %arg5[%c0_15, %c0_16], %39 {strides = array<i32>} : memref<16x128xf32, #tpu.memory_space<vmem>>, vector<16x128xf32>,
    %c0_17 = arith.constant 0 : index
    %c0_18 = arith.constant 0 : index
    %41 = vector.load %arg6[%c0_17, %c0_18] : memref<16x1xf32, #tpu.memory_space<vmem>>, vector<16x1xf32>
    %42 = arith.maximumf %41, %17 : vector<16x1xf32>
    %c0_19 = arith.constant 0 : index
    %c0_20 = arith.constant 0 : index
    %43 = vector.load %arg6[%c0_19, %c0_20] : memref<16x1xf32, #tpu.memory_space<vmem>>, vector<16x1xf32>
    tpu.vector_store %arg6[%c0_19, %c0_20], %42 {strides = array<i32>} : memref<16x1xf32, #tpu.memory_space<vmem>>, vector<16x1xf32>,
    return
  }
  func.func @transform_0(%arg0: i32, %arg1: i32) -> (i32, i32) {
    %c0_i32 = arith.constant 0 : i32
    %c0_i32_0 = arith.constant 0 : i32
    return %arg0, %c0_i32 : i32, i32
  }
  func.func @transform_1(%arg0: i32, %arg1: i32) -> (i32, i32) {
    %c0_i32 = arith.constant 0 : i32
    %c0_i32_0 = arith.constant 0 : i32
    return %c0_i32, %arg1 : i32, i32
  }
  func.func @transform_2(%arg0: i32, %arg1: i32) -> (i32, i32) {
    %c0_i32 = arith.constant 0 : i32
    %c0_i32_0 = arith.constant 0 : i32
    return %arg1, %c0_i32 : i32, i32
  }
  func.func @transform_3(%arg0: i32, %arg1: i32) -> (i32, i32) {
    %c0_i32 = arith.constant 0 : i32
    %c0_i32_0 = arith.constant 0 : i32
    return %arg0, %c0_i32 : i32, i32
  }
}

</mosaic_0001>

<llo_original>
// kernel: tpu_custom_call.1
$region0: #{tpu_custom_call.1}
  #allocation0 [shape = 'u32[]', space=smem, size = 0x4, offset = 0x4, fixed_abs, tag = 'smem constant byte address 0x4 - core index']
  #allocation1 [shape = 'u32[144,128]{1,0:T(1,128)}', space=vmem, size = 0x12000, scoped, tag = 'internal scratch']
  #allocation2 [shape = 'f32[16,1]{1,0:T(8,128)}', space=vmem, size = 0x2000, scoped, tag = 'scratch operand']
  %s0 = inlined_call_operand.vmem [shape: bf16[16,4], index: 0, kind: input, shape index: {}]
  %s1 = inlined_call_operand.vmem [shape: bf16[4,128], index: 1, kind: input, shape index: {}]
  %s2 = inlined_call_operand.hbm [shape: bf16[128,128], index: 2, kind: input, shape index: {}]
  %s3 = inlined_call_operand.hbm [shape: f32[16,128], index: 3, kind: output, shape index: {}]
  %s4 = sld [smem:[#allocation0]]
  $region30: #{tpu_custom_call.1} parent=0
    _
  %s6 = ssub.s32 1, %s4
  %s7 = scalar_select 0, %s6, %s4
  $region1: #{tpu_custom_call.1} parent=0
    #allocation3 [shape = 'u8[32768]{0}', space=vmem, size = 0x8000, scoped, tag = 'input window, operand 2, single buffered']
    #allocation4 [shape = 's32[1]{0}', space=sflag, size = 0x4, scoped, tag = 'scoped memory for tpu_custom_call.1']
    #allocation5 [shape = 's32[1]{0}', space=sflag, size = 0x4, scoped, tag = 'scoped memory for tpu_custom_call.1']
    #allocation6 [shape = 'u8[8192]{0}', space=vmem, size = 0x2000, scoped, tag = 'output window, operand 0, single buffered']
    %8 = vsyncpa [#allocation4], 0
    %9 = vsyncpa [#allocation5], 0
    // Predicated region
    $region2: #{tpu_custom_call.1} parent=1 // pred_check
      _
    $region3: #{tpu_custom_call.1} parent=1 // pred_check_branch
      %11 = sbr.rel (0) target = $region5
    $region4: #{tpu_custom_call.1} parent=1 // pred_region
      _
    $region5: #{tpu_custom_call.1} parent=1 // pred_fallthru
      _
    // Predicated region
    $region6: #{tpu_custom_call.1} parent=1 // pred_check
      _
    $region7: #{tpu_custom_call.1} parent=1 // pred_check_branch
      %13 = sbr.rel (0) target = $region9
    $region8: #{tpu_custom_call.1} parent=1 // pred_region
      _
    $region9: #{tpu_custom_call.1} parent=1 // pred_fallthru
      _
    // Predicated region
    $region10: #{tpu_custom_call.1} parent=1 // pred_check
      _
    $region11: #{tpu_custom_call.1} parent=1 // pred_check_branch
      %15 = sbr.rel (0) target = $region13
    $region12: #{tpu_custom_call.1} parent=1 // pred_region
      %s17 = ssub.s32 1024, 1024
      %18 = vsyncadd [#allocation4], %s17
      %s19 = sshll.u32 [#allocation3], 4
      %s20 = int_to_ptr.vmem [resolvable:$true] %s19
      %25 = dma.hbm_to_vmem [thread:$0]  %s2, 1024, %s20, [#allocation4], 64, 64, 4
    $region13: #{tpu_custom_call.1} parent=1 // pred_fallthru
      _
    // Predicated region
    $region14: #{tpu_custom_call.1} parent=1 // pred_check
      _
    $region15: #{tpu_custom_call.1} parent=1 // pred_check_branch
      %27 = sbr.rel (0) target = $region17
    $region16: #{tpu_custom_call.1} parent=1 // pred_region
      %28 = dma.done [#allocation4], 1024
    $region17: #{tpu_custom_call.1} parent=1 // pred_fallthru
      _
    %p30 = scmp.eq.s32.totalorder 0, 0
    // Predicated region
    $region18: #{tpu_custom_call.1} parent=1 // pred_check
      %p31 = pneg %p30
    $region19: #{tpu_custom_call.1} parent=1 // pred_check_branch
      %33 = sbr.rel (%p31) target = $region21
    $region20: #{tpu_custom_call.1} parent=1 // pred_region
      %vm34 = vcmask 7168
      %35 = vst.msk [vmem:[#allocation2] sm:$0xff] %vm34, -inf
      %36 = vst.msk [vmem:[#allocation2 + $0x8] sm:$0xff] %vm34, -inf
      %37 = vst [vmem:[#allocation6] sm:$0xff] 0.0
      %38 = vst [vmem:[#allocation6 + $0x8] sm:$0xff] 0.0
    $region21: #{tpu_custom_call.1} parent=1 // pred_fallthru
      _
    %v39 = vld [vmem:[%s0] sm:$0xf]
    %v40 = vld [vmem:[%s0 + $0x4] sm:$0xf]
    %v41 = vld [vmem:[%s1] sm:$0x3]
    %v44 = vunpack.c.l.b16 %v39
    %v45 = vunpack.c.l.b16 %v40
    %v46 = vpack.c.b16 %v45, %v44
    %vm47 = vcmask 31744
    %v49 = vsel %vm47, %v46, 0
    %vm51 = vcmask 1041408
    %v53 = vsel %vm51, %v41, 0
    %55 = vmatprep.subr.bf16.mxu0 0
    %56 = vmatpush1.bf16.msra.mxu0 0
    %57 = vmatprep.subr.bf16.mxu0 0
    %58 = vmatpush1.bf16.msra.mxu0 0
    %59 = vmatprep.subr.bf16.mxu0 0
    %60 = vmatpush1.bf16.msra.mxu0 0
    %61 = vmatprep.subr.bf16.mxu0 0
    %62 = vmatpush1.bf16.msra.mxu0 0
    %63 = vmatprep.subr.bf16.mxu0 0
    %64 = vmatpush1.bf16.msra.mxu0 0
    %65 = vmatprep.subr.bf16.mxu0 0
    %66 = vmatpush1.bf16.msra.mxu0 0
    %67 = vmatprep.subr.bf16.mxu0 0
    %68 = vmatpush1.bf16.msra.mxu0 0
    %69 = vmatprep.subr.bf16.mxu0 0
    %70 = vmatpush1.bf16.msra.mxu0 %v53
    %71 = vmatprep.subr.bf16.mxu0 0
    %72 = vmatpush2.bf16.msra.mxu0 0
    %73 = vmatprep.subr.bf16.mxu0 0
    %74 = vmatpush2.bf16.msra.mxu0 0
    %75 = vmatprep.subr.bf16.mxu0 0
    %76 = vmatpush2.bf16.msra.mxu0 0
    %77 = vmatprep.subr.bf16.mxu0 0
    %78 = vmatpush2.bf16.msra.mxu0 0
    %79 = vmatprep.subr.bf16.mxu0 0
    %80 = vmatpush2.bf16.msra.mxu0 0
    %81 = vmatprep.subr.bf16.mxu0 0
    %82 = vmatpush2.bf16.msra.mxu0 0
    %83 = vmatprep.subr.bf16.mxu0 0
    %84 = vmatpush2.bf16.msra.mxu0 0
    %85 = vmatprep.subr.bf16.mxu0 0
    %86 = vmatpush2.bf16.msra.mxu0 0
    %87 = vmatprep.mubr.bf16.mxu0 0
    %88 = vmatmul.mubr.bf16.gmra.mxu0 %v49
    %v89 = vpop.f32.mrf.mxu0
    %v90 = vadd.f32 0.0, %v89
    %v91 = vpop.f32.mrf.mxu0
    %v92 = vpop.f32.mrf.mxu0
    %v93 = vadd.f32 0.0, %v92
    %v94 = vpop.f32.mrf.mxu0
    %95 = vdwg.mxu0
    %v96 = vlaneseq
    %v97 = vand.u32 %v96, 127
    %s98 = smul.u32 0, 128
    %v99 = vstv %s98
    %v100 = vadd.s32 %v99, %v97
    %vm101 = vcmp.lt.s32.totalorder %v100, 100
    %v102 = vsel %vm101, 1, 0
    %vm103 = vcmp.eq.s32.totalorder %v102, 1
    %v104 = vsel %vm103, %v90, -inf
    %v105 = vsel %vm103, %v93, -inf
    %106 = vmax.xlane.f32.xlu0 %v104
    %v107 = vpop.xlane.xlu0 %106
    %108 = vmax.xlane.f32.xlu0 %v105
    %v109 = vpop.xlane.xlu0 %108
    %vm110 = vcmp.ge.f32.partialorder %v104, %v107
    %vm111 = vcmp.ge.f32.partialorder %v105, %v109
    %v112 = vsel %vm110, %v97, 128
    %v113 = vsel %vm111, %v97, 128
    %v114 = vand.u32 %v112, 65535
    %v115 = vshra.s32 %v112, 16
    %v116 = vcvt.s32.f32 %v114
    %v117 = vcvt.s32.f32 %v115
    %118 = vmin.xlane.f32.xlu0 %v117
    %v119 = vpop.xlane.xlu0 %118
    %vm120 = vcmp.eq.f32.partialorder %v117, %v119
    %v121 = vsel %vm120, %v116, inf
    %122 = vmin.xlane.f32.xlu0 %v121
    %v123 = vpop.xlane.xlu0 %122
    %v124 = vcvt.f32.s32 %v123
    %v125 = vcvt.f32.s32 %v119
    %v126 = vshll.u32 %v125, 16
    %v127 = vadd.s32 %v126, %v124
    %v128 = vand.u32 %v113, 65535
    %v129 = vshra.s32 %v113, 16
    %v130 = vcvt.s32.f32 %v128
    %v131 = vcvt.s32.f32 %v129
    %132 = vmin.xlane.f32.xlu0 %v131
    %v133 = vpop.xlane.xlu0 %132
    %vm134 = vcmp.eq.f32.partialorder %v131, %v133
    %v135 = vsel %vm134, %v130, inf
    %136 = vmin.xlane.f32.xlu0 %v135
    %v137 = vpop.xlane.xlu0 %136
    %v138 = vcvt.f32.s32 %v137
    %v139 = vcvt.f32.s32 %v133
    %v140 = vshll.u32 %v139, 16
    %v141 = vadd.s32 %v140, %v138
    %vm142 = vcmp.eq.s32.totalorder %v97, %v127
    %vm143 = vcmp.eq.s32.totalorder %v97, %v141
    %v144 = vsel %vm142, 1, 0
    %v145 = vsel %vm143, 1, 0
    %v146 = vcvt.s32.f32 %v144
    %v147 = vcvt.s32.f32 %v145
    %v148 = vpack.c.bf16 %v147, %v146
    %v149 = vld [vmem:[#allocation3] sm:$0xf]
    %v150 = vld [vmem:[#allocation3 + $0x4] sm:$0xf]
    %v151 = vld [vmem:[#allocation3 + $0x8] sm:$0xf]
    %v152 = vld [vmem:[#allocation3 + $0xc] sm:$0xf]
    %v153 = vld [vmem:[#allocation3 + $0x10] sm:$0xf]
    %v154 = vld [vmem:[#allocation3 + $0x14] sm:$0xf]
    %v155 = vld [vmem:[#allocation3 + $0x18] sm:$0xf]
    %v156 = vld [vmem:[#allocation3 + $0x1c] sm:$0xf]
    %v157 = vld [vmem:[#allocation3 + $0x20] sm:$0xf]
    %v158 = vld [vmem:[#allocation3 + $0x24] sm:$0xf]
    %v159 = vld [vmem:[#allocation3 + $0x28] sm:$0xf]
    %v160 = vld [vmem:[#allocation3 + $0x2c] sm:$0xf]
    %v161 = vld [vmem:[#allocation3 + $0x30] sm:$0xf]
    %v162 = vld [vmem:[#allocation3 + $0x34] sm:$0xf]
    %v163 = vld [vmem:[#allocation3 + $0x38] sm:$0xf]
    %v164 = vld [vmem:[#allocation3 + $0x3c] sm:$0xf]
    %v181 = vunpack.c.l.b16 %v149
    %v182 = vunpack.c.l.b16 %v150
    %v183 = vunpack.c.l.b16 %v151
    %v184 = vunpack.c.l.b16 %v152
    %v185 = vunpack.c.l.b16 %v153
    %v186 = vunpack.c.l.b16 %v154
    %v187 = vunpack.c.l.b16 %v155
    %v188 = vunpack.c.l.b16 %v156
    %v189 = vunpack.c.l.b16 %v157
    %v190 = vunpack.c.l.b16 %v158
    %v191 = vunpack.c.l.b16 %v159
    %v192 = vunpack.c.l.b16 %v160
    %v193 = vunpack.c.l.b16 %v161
    %v194 = vunpack.c.l.b16 %v162
    %v195 = vunpack.c.l.b16 %v163
    %v196 = vunpack.c.l.b16 %v164
    %v197 = vpack.c.b16 %v182, %v181
    %v198 = vpack.c.b16 %v184, %v183
    %v199 = vpack.c.b16 %v186, %v185
    %v200 = vpack.c.b16 %v188, %v187
    %v201 = vpack.c.b16 %v190, %v189
    %v202 = vpack.c.b16 %v192, %v191
    %v203 = vpack.c.b16 %v194, %v193
    %v204 = vpack.c.b16 %v196, %v195
    %213 = vmatprep.subr.bf16.mxu0 0
    %214 = vmatpush1.bf16.msra.mxu0 %v204
    %215 = vmatprep.subr.bf16.mxu0 0
    %216 = vmatpush1.bf16.msra.mxu0 %v203
    %217 = vmatprep.subr.bf16.mxu0 0
    %218 = vmatpush1.bf16.msra.mxu0 %v202
    %219 = vmatprep.subr.bf16.mxu0 0
    %220 = vmatpush1.bf16.msra.mxu0 %v201
    %221 = vmatprep.subr.bf16.mxu0 0
    %222 = vmatpush1.bf16.msra.mxu0 %v200
    %223 = vmatprep.subr.bf16.mxu0 0
    %224 = vmatpush1.bf16.msra.mxu0 %v199
    %225 = vmatprep.subr.bf16.mxu0 0
    %226 = vmatpush1.bf16.msra.mxu0 %v198
    %227 = vmatprep.subr.bf16.mxu0 0
    %228 = vmatpush1.bf16.msra.mxu0 %v197
    %229 = vmatprep.subr.bf16.mxu0 0
    %230 = vmatpush2.bf16.msra.mxu0 0
    %231 = vmatprep.subr.bf16.mxu0 0
    %232 = vmatpush2.bf16.msra.mxu0 0
    %233 = vmatprep.subr.bf16.mxu0 0
    %234 = vmatpush2.bf16.msra.mxu0 0
    %235 = vmatprep.subr.bf16.mxu0 0
    %236 = vmatpush2.bf16.msra.mxu0 0
    %237 = vmatprep.subr.bf16.mxu0 0
    %238 = vmatpush2.bf16.msra.mxu0 0
    %239 = vmatprep.subr.bf16.mxu0 0
    %240 = vmatpush2.bf16.msra.mxu0 0
    %241 = vmatprep.subr.bf16.mxu0 0
    %242 = vmatpush2.bf16.msra.mxu0 0
    %243 = vmatprep.subr.bf16.mxu0 0
    %244 = vmatpush2.bf16.msra.mxu0 0
    %245 = vmatprep.mubr.bf16.mxu0 0
    %246 = vmatmul.mubr.bf16.gmra.mxu0 %v148
    %v247 = vpop.f32.mrf.mxu0
    %v248 = vadd.f32 0.0, %v247
    %v249 = vpop.f32.mrf.mxu0
    %v250 = vpop.f32.mrf.mxu0
    %v251 = vadd.f32 0.0, %v250
    %v252 = vpop.f32.mrf.mxu0
    %253 = vdwg.mxu0
    %v254 = vld [vmem:[#allocation2] sm:$0xff]
    %v255 = vld [vmem:[#allocation2 + $0x8] sm:$0xff]
    %vm256 = vcmp.gt.f32.partialorder %v107, %v254
    %vm257 = vcmp.gt.f32.partialorder %v109, %v255
    %v258 = vld [vmem:[#allocation6] sm:$0xff]
    %v259 = vld [vmem:[#allocation6 + $0x8] sm:$0xff]
    %v260 = vsel %vm256, 1, 0
    %v261 = vsel %vm257, 1, 0
    %262 = vset.pattern.permute.xlu0 0
    %263 = vperm.xlu0 %262, %v260
    %v264 = vpop.permute.xlu0 %263
    %265 = vset.pattern.permute.xlu0 0
    %266 = vperm.xlu0 %265, %v261
    %v267 = vpop.permute.xlu0 %266
    %vm268 = vcmp.eq.s32.totalorder %v264, 1
    %vm269 = vcmp.eq.s32.totalorder %v267, 1
    %v270 = vsel %vm268, %v248, %v258
    %v271 = vsel %vm269, %v251, %v259
    %272 = vst [vmem:[#allocation6] sm:$0xff] %v270
    %273 = vst [vmem:[#allocation6 + $0x8] sm:$0xff] %v271
    %v274 = vld [vmem:[#allocation2] sm:$0xff]
    %v275 = vld [vmem:[#allocation2 + $0x8] sm:$0xff]
    %v276 = vmax.f32 %v274, %v107
    %v277 = vmax.f32 %v275, %v109
    %vm278 = vcmask 7168
    %279 = vst.msk [vmem:[#allocation2] sm:$0xff] %vm278, %v276
    %280 = vst.msk [vmem:[#allocation2 + $0x8] sm:$0xff] %vm278, %v277
    // Predicated region
    $region22: #{tpu_custom_call.1} parent=1 // pred_check
      _
    $region23: #{tpu_custom_call.1} parent=1 // pred_check_branch
      %282 = sbr.rel (0) target = $region25
    $region24: #{tpu_custom_call.1} parent=1 // pred_region
      %s284 = ssub.s32 256, 256
      %285 = vsyncadd [#allocation5], %s284
      %s286 = sshll.u32 [#allocation6], 4
      %s287 = int_to_ptr.vmem [resolvable:$true] %s286
      %292 = dma.vmem_to_hbm [thread:$0]  %s287, 256, %s3, [#allocation5], 128, 128, 8
    $region25: #{tpu_custom_call.1} parent=1 // pred_fallthru
      _
    // Predicated region
    $region26: #{tpu_custom_call.1} parent=1 // pred_check
      _
    $region27: #{tpu_custom_call.1} parent=1 // pred_check_branch
      %294 = sbr.rel (0) target = $region29
    $region28: #{tpu_custom_call.1} parent=1 // pred_region
      %295 = dma.done [#allocation5], 256
    $region29: #{tpu_custom_call.1} parent=1 // pred_fallthru
      _
    %296 = vsyncpa [#allocation4], 1
    %297 = vsyncpa [#allocation5], 1

</llo_original>
